<compile_context>
chip_gen: v7x
topology: tpu7x:2x2x1
jax: 0.10.0
libtpu: 0.0.40
codegen_flags: <defaults>
</compile_context>

<pallas_src>
import numpy as np
import jax
import jax.numpy as jnp
from jax import lax
from jax.experimental import pallas as pl
from jax.experimental.pallas import tpu as pltpu


_SINGLE_SHOT_W1_BYTES = 16 * 1024 * 1024   # single-copy bf16 w1 size to keep K collapsed
_VMEM_WORKING_BUDGET = 44 * 1024 * 1024    # v7x-safe working-set budget (64 MiB physical)


def _round_up(x, m):
    return (x + m - 1) // m * m


def _pick_tb(B, Hp, k_width, x_bytes, budget=_VMEM_WORKING_BUDGET):
    """Pick the batch (lane) tile.  Conservative working-set estimate:
    w1 (x2 buffers) + x tile (x2 buffers) + [Hp,TB] f32 result/acc + small side/out."""
    w1_bytes = 2 * Hp * k_width * 2
    bp128 = _round_up(max(B, 1), 128)
    for tb in (1024, 512, 256, 128):
        if tb > bp128:
            continue
        nb = -(-B // tb)
        if B > 128 and nb < 2:
            # guarantee >=2 batch tiles for mid-size batches so v7x's 2 TCs both work
            continue
        need = (w1_bytes + 2 * tb * k_width * x_bytes + Hp * tb * 4
                + 2 * 8 * tb * 4 + 2 * Hp * 128 * 4)
        if need <= budget:
            return tb, need
    tb = 128
    need = w1_bytes + 2 * tb * k_width * x_bytes + Hp * tb * 4
    return tb, need


def _choose_tk(Dp, Hp, x_bytes):
    """K tile for the (rare) fallback path where w1 does not fit VMEM."""
    for tk in (2048, 1024, 512, 256, 128):
        if Dp % tk == 0 and 2 * Hp * tk * 2 + 2 * 128 * tk * x_bytes <= 16 * 1024 * 1024:
            return tk
    return 128


# ---------------------------------------------------------------------------
# Kernels
# ---------------------------------------------------------------------------

def _layer2fc_kernel_resident(w1_ref, x_ref, side_ref, b2_ref, o_ref):
    # w1_ref  : [Hp, Dp] bf16 (resident, constant index_map)
    # x_ref   : [TB, Dp] input dtype (batch-major, cast to bf16 here)
    # side_ref: [Hp, 2]  f32 -- column 0 = b1, column 1 = w2
    # b2_ref  : [1, 1]   f32 (SMEM scalar)
    # o_ref   : [1, TB]  f32 (lane-dense output row)
    x_bf = x_ref[...].astype(jnp.bfloat16)
    # Layer 1 on the MXU: contract on K with the RHS transposed -> [Hp, TB], f32 acc.
    h = lax.dot_general(w1_ref[...], x_bf,
                        dimension_numbers=(((1,), (1,)), ((), ())),
                        preferred_element_type=jnp.float32)
    side = side_ref[...]
    b1 = side[:, 0:1]
    w2 = side[:, 1:2]
    h = jnp.maximum(h + b1, 0.0)                                   # bias + ReLU (f32, VPU)
    # Layer 2 (N=1): per-lane multiply + sublane reduce instead of a skinny matmul.
    out_row = jnp.sum(h * w2, axis=0, keepdims=True) + b2_ref[0, 0]
    o_ref[...] = out_row.astype(o_ref.dtype)


def _layer2fc_kernel_ktiled(w1_ref, x_ref, side_ref, b2_ref, o_ref, acc_ref):
    # Fallback for very large H*D: standard K-reduction with init/finalize.
    k = pl.program_id(1)

    @pl.when(k == 0)
    def _init():
        acc_ref[...] = jnp.zeros_like(acc_ref)

    x_bf = x_ref[...].astype(jnp.bfloat16)
    acc_ref[...] += lax.dot_general(w1_ref[...], x_bf,
                                    dimension_numbers=(((1,), (1,)), ((), ())),
                                    preferred_element_type=jnp.float32)

    @pl.when(k == pl.num_programs(1) - 1)
    def _finalize():
        side = side_ref[...]
        b1 = side[:, 0:1]
        w2 = side[:, 1:2]
        h = jnp.maximum(acc_ref[...] + b1, 0.0)
        out_row = jnp.sum(h * w2, axis=0, keepdims=True) + b2_ref[0, 0]
        o_ref[...] = out_row.astype(o_ref.dtype)


# ---------------------------------------------------------------------------
# Wrapper
# ---------------------------------------------------------------------------

def prepare_params(w1, b1, w2, b2, compute_dtype=jnp.bfloat16):
    """One-time parameter layout/padding (outside the hot path).
    w1: [H, D], b1: [H], w2: [1, H], b2: [1]  (PyTorch nn.Linear shapes)."""
    H, D = w1.shape
    Hp = _round_up(H, 16)        # sublane/bf16-packing friendly; do NOT pad to MXU dim
    Dp = _round_up(D, 128)       # lane-aligned K extent (single source of truth)
    w1p = jnp.zeros((Hp, Dp), compute_dtype).at[:H, :D].set(w1.astype(compute_dtype))
    side = jnp.zeros((Hp, 2), jnp.float32)
    side = side.at[:H, 0].set(b1.astype(jnp.float32))
    side = side.at[:H, 1].set(w2.reshape(-1).astype(jnp.float32))
    b2p = jnp.asarray(b2, jnp.float32).reshape(1, 1)
    return w1p, side, b2p


def layer2fc_forward(x, w1p, sidep, b2p):
    """x: [B, ...] (e.g. NCHW like PyTorch). Returns [B, 1] float32."""
    B = x.shape[0]
    D = int(np.prod(x.shape[1:]))
    Hp, Dp = w1p.shape
    assert Dp >= D, "params were prepared for a smaller feature dim than x provides"

    x2d = x.reshape(B, D)                      # flatten(1) -- layout glue, no data pass
    x_bytes = x2d.dtype.itemsize

    single_shot = (Hp * Dp * 2) <= _SINGLE_SHOT_W1_BYTES
    TK = Dp if single_shot else _choose_tk(Dp, Hp, x_bytes)
    nk = Dp // TK
    TB, need = _pick_tb(B, Hp, TK, x_bytes)
    Bp = _round_up(B, TB)
    nb = Bp // TB

    # Exactly one (optional) pad pass in the wrapper: no transpose, native dtype.
    if Bp != B or Dp != D:
        x2d = jnp.pad(x2d, ((0, Bp - B), (0, Dp - D)))

    vmem_limit = int(min(48 * 1024 * 1024,
                         max(32 * 1024 * 1024, need + 8 * 1024 * 1024)))

    if single_shot:
        out = pl.pallas_call(
            _layer2fc_kernel_resident,
            out_shape=jax.ShapeDtypeStruct((1, Bp), jnp.float32),
            grid=(nb,),
            in_specs=[
                pl.BlockSpec((Hp, Dp), lambda i: (0, 0)),          # w1: resident
                pl.BlockSpec((TB, Dp), lambda i: (i, 0)),          # x: batch-major
                pl.BlockSpec((Hp, 2), lambda i: (0, 0)),           # [b1 | w2]
                pl.BlockSpec(memory_space=pltpu.MemorySpace.SMEM), # b2 scalar
            ],
            out_specs=pl.BlockSpec((1, TB), lambda i: (0, i)),
            compiler_params=pltpu.CompilerParams(
                dimension_semantics=("parallel",),
                vmem_limit_bytes=vmem_limit),
        )(w1p, x2d, sidep, b2p)
    else:
        out = pl.pallas_call(
            _layer2fc_kernel_ktiled,
            out_shape=jax.ShapeDtypeStruct((1, Bp), jnp.float32),
            grid=(nb, nk),
            in_specs=[
                pl.BlockSpec((Hp, TK), lambda i, k: (0, k)),        # w1 K-tile
                pl.BlockSpec((TB, TK), lambda i, k: (i, k)),        # x K-tile
                pl.BlockSpec((Hp, 2), lambda i, k: (0, 0)),         # [b1 | w2]
                pl.BlockSpec(memory_space=pltpu.MemorySpace.SMEM),  # b2 scalar
            ],
            out_specs=pl.BlockSpec((1, TB), lambda i, k: (0, i)),
            scratch_shapes=[pltpu.VMEM((Hp, TB), jnp.float32)],
            compiler_params=pltpu.CompilerParams(
                dimension_semantics=("parallel", "arbitrary"),
                vmem_limit_bytes=vmem_limit),
        )(w1p, x2d, sidep, b2p)

    # Padded batch columns hold relu(b1)*w2+b2 garbage; they are sliced off here.
    return out[0, :B].reshape(B, 1)


def make_params(key, input_size_x_feature, hidden_dim):
    """Deterministic init mirroring nn.Linear shapes."""
    D = int(np.prod(input_size_x_feature))
    k1, k2, k3, k4 = jax.random.split(key, 4)
    bound1 = 1.0 / np.sqrt(D)
    bound2 = 1.0 / np.sqrt(hidden_dim)
    w1 = jax.random.uniform(k1, (hidden_dim, D), jnp.float32, -bound1, bound1)
    b1 = jax.random.uniform(k2, (hidden_dim,), jnp.float32, -bound1, bound1)
    w2 = jax.random.uniform(k3, (1, hidden_dim), jnp.float32, -bound2, bound2)
    b2 = jax.random.uniform(k4, (1,), jnp.float32, -bound2, bound2)
    return w1, b1, w2, b2


if __name__ == "__main__":
    # Shapes consistent with the module: per-sample feature (4, 16, 16) -> D=1024,
    # batch B=2, hidden_dim=32.
    input_size_x_feature = (4, 16, 16)
    hidden_dim = 32
    B = 2

    key = jax.random.PRNGKey(0)
    kx, kp = jax.random.split(key)
    x = jax.random.normal(kx, (B,) + input_size_x_feature, dtype=jnp.float32)
    w1, b1, w2, b2 = make_params(kp, input_size_x_feature, hidden_dim)

    # Weight layout/padding done once, outside the per-call path.
    w1p, sidep, b2p = prepare_params(w1, b1, w2, b2)

    fwd = jax.jit(layer2fc_forward)
    out = jax.block_until_ready(fwd(x, w1p, sidep, b2p))

    # Reference in plain JAX, matching the kernel's bf16-input / f32-accumulate matmul.
    x2d = x.reshape(B, -1)
    x_bf = x2d.astype(jnp.bfloat16).astype(jnp.float32)
    w1_bf = w1.astype(jnp.bfloat16).astype(jnp.float32)
    h_ref = jnp.maximum(
        jnp.dot(x_bf, w1_bf.T, precision=jax.lax.Precision.HIGHEST) + b1, 0.0)
    ref = (h_ref * w2.reshape(1, -1)).sum(axis=-1, keepdims=True) + b2.reshape(1, 1)

    np.testing.assert_allclose(np.asarray(out), np.asarray(ref), rtol=5e-3, atol=5e-3)
    assert out.shape == (B, 1)
    print("KERNEL_OK")
</pallas_src>

<mosaic_0001>
module attributes {stable_mosaic.version = 11 : i64} {
  func.func @_layer2fc_kernel_resident(%arg0: i32, %arg1: memref<32x1024xbf16, #tpu.memory_space<vmem>>, %arg2: memref<128x1024xf32, #tpu.memory_space<vmem>>, %arg3: memref<32x2xf32, #tpu.memory_space<vmem>>, %arg4: memref<1x1xf32, #tpu.memory_space<smem>>, %arg5: memref<1x128xf32, #tpu.memory_space<vmem>>) attributes {dimension_semantics = [#tpu.dimension_semantics<parallel>], iteration_bounds = array<i64: 1>, scalar_prefetch = 0 : i64, scratch_operands = 0 : i64, tpu.core_type = #tpu.core_type<tc>, window_params = [{pipeline_mode = #tpu.pipeline_mode<synchronous>, transform_indices = @transform_0, window_bounds = array<i64: 32, 1024>}, {transform_indices = @transform_1, window_bounds = array<i64: 128, 1024>}, {pipeline_mode = #tpu.pipeline_mode<synchronous>, transform_indices = @transform_2, window_bounds = array<i64: 32, 2>}, {transform_indices = @transform_3, window_bounds = array<i64: 1, 1>}, {transform_indices = @transform_4, window_bounds = array<i64: 1, 128>}]} {
    %c0 = arith.constant 0 : index
    %c0_0 = arith.constant 0 : index
    %0 = vector.load %arg2[%c0, %c0_0] : memref<128x1024xf32, #tpu.memory_space<vmem>>, vector<128x1024xf32>
    %1 = arith.truncf %0 : vector<128x1024xf32> to vector<128x1024xbf16>
    %c0_1 = arith.constant 0 : index
    %c0_2 = arith.constant 0 : index
    %2 = vector.load %arg1[%c0_1, %c0_2] : memref<32x1024xbf16, #tpu.memory_space<vmem>>, vector<32x1024xbf16>
    %cst = arith.constant dense<0.000000e+00> : vector<32x128xf32>
    %3 = tpu.matmul %2, %1, %cst {dimension_numbers = #tpu.dot_dimension_numbers<[1], [1], [0], [0], [0, 0, 1, 0], [], []>} : vector<32x1024xbf16>, vector<128x1024xbf16>, vector<32x128xf32> -> vector<32x128xf32>
    %c0_3 = arith.constant 0 : index
    %c0_4 = arith.constant 0 : index
    %4 = vector.load %arg3[%c0_3, %c0_4] : memref<32x2xf32, #tpu.memory_space<vmem>>, vector<32x2xf32>
    %5 = vector.extract_strided_slice %4 {offsets = [0, 0], sizes = [32, 1], strides = [1, 1]} : vector<32x2xf32> to vector<32x1xf32>
    %6 = vector.extract_strided_slice %4 {offsets = [0, 1], sizes = [32, 1], strides = [1, 1]} : vector<32x2xf32> to vector<32x1xf32>
    %7 = vector.broadcast %5 : vector<32x1xf32> to vector<32x128xf32>
    %8 = arith.addf %3, %7 : vector<32x128xf32>
    %cst_5 = arith.constant 0.000000e+00 : f32
    %9 = vector.broadcast %cst_5 : f32 to vector<32x128xf32>
    %10 = arith.maximumf %8, %9 : vector<32x128xf32>
    %11 = vector.broadcast %6 : vector<32x1xf32> to vector<32x128xf32>
    %12 = arith.mulf %10, %11 : vector<32x128xf32>
    %cst_6 = arith.constant dense<0.000000e+00> : vector<128xf32>
    %13 = vector.multi_reduction <add>, %12, %cst_6 [0] : vector<32x128xf32> to vector<128xf32>
    %14 = vector.shape_cast %13 : vector<128xf32> to vector<1x128xf32>
    %c0_7 = arith.constant 0 : index
    %c0_8 = arith.constant 0 : index
    %15 = memref.load %arg4[%c0_7, %c0_8] : memref<1x1xf32, #tpu.memory_space<smem>>
    %16 = vector.broadcast %15 : f32 to vector<1x128xf32>
    %17 = arith.addf %14, %16 : vector<1x128xf32>
    %c0_9 = arith.constant 0 : index
    %c0_10 = arith.constant 0 : index
    %18 = vector.load %arg5[%c0_9, %c0_10] : memref<1x128xf32, #tpu.memory_space<vmem>>, vector<1x128xf32>
    tpu.vector_store %arg5[%c0_9, %c0_10], %17 {strides = array<i32>} : memref<1x128xf32, #tpu.memory_space<vmem>>, vector<1x128xf32>,
    return
  }
  func.func @transform_0(%arg0: i32) -> (i32, i32) {
    %c0_i32 = arith.constant 0 : i32
    %c0_i32_0 = arith.constant 0 : i32
    %c0_i32_1 = arith.constant 0 : i32
    return %c0_i32, %c0_i32_0 : i32, i32
  }
  func.func @transform_1(%arg0: i32) -> (i32, i32) {
    %c0_i32 = arith.constant 0 : i32
    %c0_i32_0 = arith.constant 0 : i32
    return %arg0, %c0_i32 : i32, i32
  }
  func.func @transform_2(%arg0: i32) -> (i32, i32) {
    %c0_i32 = arith.constant 0 : i32
    %c0_i32_0 = arith.constant 0 : i32
    %c0_i32_1 = arith.constant 0 : i32
    return %c0_i32, %c0_i32_0 : i32, i32
  }
  func.func @transform_3(%arg0: i32) -> (i32, i32) {
    %c0_i32 = arith.constant 0 : i32
    %c0_i32_0 = arith.constant 0 : i32
    %c0_i32_1 = arith.constant 0 : i32
    return %c0_i32, %c0_i32_0 : i32, i32
  }
  func.func @transform_4(%arg0: i32) -> (i32, i32) {
    %c0_i32 = arith.constant 0 : i32
    %c0_i32_0 = arith.constant 0 : i32
    return %c0_i32, %arg0 : i32, i32
  }
}

</mosaic_0001>

<llo_original>
// kernel: layer2fc_forward.1
$region0: #{layer2fc_forward.1}
  #allocation0 [shape = 'u32[]', space=smem, size = 0x4, offset = 0x4, fixed_abs, tag = 'smem constant byte address 0x4 - core index']
  #allocation1 [shape = 'u32[144,128]{1,0:T(1,128)}', space=vmem, size = 0x12000, scoped, tag = 'internal scratch']
  #allocation2 [shape = 'f32[1,1]{1,0:T(1,128)S(6)}', space=smem, size = 0x200, scoped, tag = 'scoped memory for layer2fc_forward.1']
  %s0 = inlined_call_operand.vmem [shape: bf16[32,1024], index: 0, kind: input, shape index: {}]
  %s1 = inlined_call_operand.vmem [shape: f32[128,1024], index: 1, kind: input, shape index: {}]
  %s2 = inlined_call_operand.vmem [shape: f32[32,2], index: 2, kind: input, shape index: {}]
  %s3 = inlined_call_operand.<no memory space> [shape: f32[1,1], index: 3, kind: input, shape index: {}]
  %s4 = inlined_call_operand.vmem [shape: f32[1,128], index: 4, kind: output, shape index: {}]
  %s5 = sld [smem:[#allocation0]]
  $region26: #{layer2fc_forward.1} parent=0
    _
  %s7 = ssub.s32 1, %s5
  %s8 = scalar_select 0, %s7, %s5
  %9 = sst [smem:[#allocation2]] %s3
  // Predicated region
  $region2: #{layer2fc_forward.1} parent=0 // pred_check
    _
  $region3: #{layer2fc_forward.1} parent=0 // pred_check_branch
    %11 = sbr.rel (0) target = $region5
  $region4: #{layer2fc_forward.1} parent=0 // pred_region
    _
  $region5: #{layer2fc_forward.1} parent=0 // pred_fallthru
    _
  // Predicated region
  $region6: #{layer2fc_forward.1} parent=0 // pred_check
    _
  $region7: #{layer2fc_forward.1} parent=0 // pred_check_branch
    %13 = sbr.rel (0) target = $region9
  $region8: #{layer2fc_forward.1} parent=0 // pred_region
    _
  $region9: #{layer2fc_forward.1} parent=0 // pred_fallthru
    _
  // Predicated region
  $region10: #{layer2fc_forward.1} parent=0 // pred_check
    _
  $region11: #{layer2fc_forward.1} parent=0 // pred_check_branch
    %15 = sbr.rel (0) target = $region13
  $region12: #{layer2fc_forward.1} parent=0 // pred_region
    _
  $region13: #{layer2fc_forward.1} parent=0 // pred_fallthru
    _
  // Predicated region
  $region14: #{layer2fc_forward.1} parent=0 // pred_check
    _
  $region15: #{layer2fc_forward.1} parent=0 // pred_check_branch
    %17 = sbr.rel (0) target = $region17
  $region16: #{layer2fc_forward.1} parent=0 // pred_region
    _
  $region17: #{layer2fc_forward.1} parent=0 // pred_fallthru
    _
  %v19 = vld [vmem:[%s1] sm:$0xff]
  %v20 = vld [vmem:[%s1 + $0x8] sm:$0xff]
  %v21 = vld [vmem:[%s1 + $0x10] sm:$0xff]
  %v22 = vld [vmem:[%s1 + $0x18] sm:$0xff]
  %v23 = vld [vmem:[%s1 + $0x20] sm:$0xff]
  %v24 = vld [vmem:[%s1 + $0x28] sm:$0xff]
  %v25 = vld [vmem:[%s1 + $0x30] sm:$0xff]
  %v26 = vld [vmem:[%s1 + $0x38] sm:$0xff]
  %v27 = vld [vmem:[%s1 + $0x40] sm:$0xff]
  %v28 = vld [vmem:[%s1 + $0x48] sm:$0xff]
  %v29 = vld [vmem:[%s1 + $0x50] sm:$0xff]
  %v30 = vld [vmem:[%s1 + $0x58] sm:$0xff]
  %v31 = vld [vmem:[%s1 + $0x60] sm:$0xff]
  %v32 = vld [vmem:[%s1 + $0x68] sm:$0xff]
  %v33 = vld [vmem:[%s1 + $0x70] sm:$0xff]
  %v34 = vld [vmem:[%s1 + $0x78] sm:$0xff]
  %v35 = vld [vmem:[%s1 + $0x80] sm:$0xff]
  %v36 = vld [vmem:[%s1 + $0x88] sm:$0xff]
  %v37 = vld [vmem:[%s1 + $0x90] sm:$0xff]
  %v38 = vld [vmem:[%s1 + $0x98] sm:$0xff]
  %v39 = vld [vmem:[%s1 + $0xa0] sm:$0xff]
  %v40 = vld [vmem:[%s1 + $0xa8] sm:$0xff]
  %v41 = vld [vmem:[%s1 + $0xb0] sm:$0xff]
  %v42 = vld [vmem:[%s1 + $0xb8] sm:$0xff]
  %v43 = vld [vmem:[%s1 + $0xc0] sm:$0xff]
  %v44 = vld [vmem:[%s1 + $0xc8] sm:$0xff]
  %v45 = vld [vmem:[%s1 + $0xd0] sm:$0xff]
  %v46 = vld [vmem:[%s1 + $0xd8] sm:$0xff]
  %v47 = vld [vmem:[%s1 + $0xe0] sm:$0xff]
  %v48 = vld [vmem:[%s1 + $0xe8] sm:$0xff]
  %v49 = vld [vmem:[%s1 + $0xf0] sm:$0xff]
  %v50 = vld [vmem:[%s1 + $0xf8] sm:$0xff]
  %v51 = vld [vmem:[%s1 + $0x100] sm:$0xff]
  %v52 = vld [vmem:[%s1 + $0x108] sm:$0xff]
  %v53 = vld [vmem:[%s1 + $0x110] sm:$0xff]
  %v54 = vld [vmem:[%s1 + $0x118] sm:$0xff]
  %v55 = vld [vmem:[%s1 + $0x120] sm:$0xff]
  %v56 = vld [vmem:[%s1 + $0x128] sm:$0xff]
  %v57 = vld [vmem:[%s1 + $0x130] sm:$0xff]
  %v58 = vld [vmem:[%s1 + $0x138] sm:$0xff]
  %v59 = vld [vmem:[%s1 + $0x140] sm:$0xff]
  %v60 = vld [vmem:[%s1 + $0x148] sm:$0xff]
  %v61 = vld [vmem:[%s1 + $0x150] sm:$0xff]
  %v62 = vld [vmem:[%s1 + $0x158] sm:$0xff]
  %v63 = vld [vmem:[%s1 + $0x160] sm:$0xff]
  %v64 = vld [vmem:[%s1 + $0x168] sm:$0xff]
  %v65 = vld [vmem:[%s1 + $0x170] sm:$0xff]
  %v66 = vld [vmem:[%s1 + $0x178] sm:$0xff]
  %v67 = vld [vmem:[%s1 + $0x180] sm:$0xff]
  %v68 = vld [vmem:[%s1 + $0x188] sm:$0xff]
  %v69 = vld [vmem:[%s1 + $0x190] sm:$0xff]
  %v70 = vld [vmem:[%s1 + $0x198] sm:$0xff]
  %v71 = vld [vmem:[%s1 + $0x1a0] sm:$0xff]
  %v72 = vld [vmem:[%s1 + $0x1a8] sm:$0xff]
  %v73 = vld [vmem:[%s1 + $0x1b0] sm:$0xff]
  %v74 = vld [vmem:[%s1 + $0x1b8] sm:$0xff]
  %v75 = vld [vmem:[%s1 + $0x1c0] sm:$0xff]
  %v76 = vld [vmem:[%s1 + $0x1c8] sm:$0xff]
  %v77 = vld [vmem:[%s1 + $0x1d0] sm:$0xff]
  %v78 = vld [vmem:[%s1 + $0x1d8] sm:$0xff]
  %v79 = vld [vmem:[%s1 + $0x1e0] sm:$0xff]
  %v80 = vld [vmem:[%s1 + $0x1e8] sm:$0xff]
  %v81 = vld [vmem:[%s1 + $0x1f0] sm:$0xff]
  %v82 = vld [vmem:[%s1 + $0x1f8] sm:$0xff]
  %v83 = vld [vmem:[%s1 + $0x200] sm:$0xff]
  %v84 = vld [vmem:[%s1 + $0x208] sm:$0xff]
  %v85 = vld [vmem:[%s1 + $0x210] sm:$0xff]
  %v86 = vld [vmem:[%s1 + $0x218] sm:$0xff]
  %v87 = vld [vmem:[%s1 + $0x220] sm:$0xff]
  %v88 = vld [vmem:[%s1 + $0x228] sm:$0xff]
  %v89 = vld [vmem:[%s1 + $0x230] sm:$0xff]
  %v90 = vld [vmem:[%s1 + $0x238] sm:$0xff]
  %v91 = vld [vmem:[%s1 + $0x240] sm:$0xff]
  %v92 = vld [vmem:[%s1 + $0x248] sm:$0xff]
  %v93 = vld [vmem:[%s1 + $0x250] sm:$0xff]
  %v94 = vld [vmem:[%s1 + $0x258] sm:$0xff]
  %v95 = vld [vmem:[%s1 + $0x260] sm:$0xff]
  %v96 = vld [vmem:[%s1 + $0x268] sm:$0xff]
  %v97 = vld [vmem:[%s1 + $0x270] sm:$0xff]
  %v98 = vld [vmem:[%s1 + $0x278] sm:$0xff]
  %v99 = vld [vmem:[%s1 + $0x280] sm:$0xff]
  %v100 = vld [vmem:[%s1 + $0x288] sm:$0xff]
  %v101 = vld [vmem:[%s1 + $0x290] sm:$0xff]
  %v102 = vld [vmem:[%s1 + $0x298] sm:$0xff]
  %v103 = vld [vmem:[%s1 + $0x2a0] sm:$0xff]
  %v104 = vld [vmem:[%s1 + $0x2a8] sm:$0xff]
  %v105 = vld [vmem:[%s1 + $0x2b0] sm:$0xff]
  %v106 = vld [vmem:[%s1 + $0x2b8] sm:$0xff]
  %v107 = vld [vmem:[%s1 + $0x2c0] sm:$0xff]
  %v108 = vld [vmem:[%s1 + $0x2c8] sm:$0xff]
  %v109 = vld [vmem:[%s1 + $0x2d0] sm:$0xff]
  %v110 = vld [vmem:[%s1 + $0x2d8] sm:$0xff]
  %v111 = vld [vmem:[%s1 + $0x2e0] sm:$0xff]
  %v112 = vld [vmem:[%s1 + $0x2e8] sm:$0xff]
  %v113 = vld [vmem:[%s1 + $0x2f0] sm:$0xff]
  %v114 = vld [vmem:[%s1 + $0x2f8] sm:$0xff]
  %v115 = vld [vmem:[%s1 + $0x300] sm:$0xff]
  %v116 = vld [vmem:[%s1 + $0x308] sm:$0xff]
  %v117 = vld [vmem:[%s1 + $0x310] sm:$0xff]
  %v118 = vld [vmem:[%s1 + $0x318] sm:$0xff]
  %v119 = vld [vmem:[%s1 + $0x320] sm:$0xff]
  %v120 = vld [vmem:[%s1 + $0x328] sm:$0xff]
  %v121 = vld [vmem:[%s1 + $0x330] sm:$0xff]
  %v122 = vld [vmem:[%s1 + $0x338] sm:$0xff]
  %v123 = vld [vmem:[%s1 + $0x340] sm:$0xff]
  %v124 = vld [vmem:[%s1 + $0x348] sm:$0xff]
  %v125 = vld [vmem:[%s1 + $0x350] sm:$0xff]
  %v126 = vld [vmem:[%s1 + $0x358] sm:$0xff]
  %v127 = vld [vmem:[%s1 + $0x360] sm:$0xff]
  %v128 = vld [vmem:[%s1 + $0x368] sm:$0xff]
  %v129 = vld [vmem:[%s1 + $0x370] sm:$0xff]
  %v130 = vld [vmem:[%s1 + $0x378] sm:$0xff]
  %v131 = vld [vmem:[%s1 + $0x380] sm:$0xff]
  %v132 = vld [vmem:[%s1 + $0x388] sm:$0xff]
  %v133 = vld [vmem:[%s1 + $0x390] sm:$0xff]
  %v134 = vld [vmem:[%s1 + $0x398] sm:$0xff]
  %v135 = vld [vmem:[%s1 + $0x3a0] sm:$0xff]
  %v136 = vld [vmem:[%s1 + $0x3a8] sm:$0xff]
  %v137 = vld [vmem:[%s1 + $0x3b0] sm:$0xff]
  %v138 = vld [vmem:[%s1 + $0x3b8] sm:$0xff]
  %v139 = vld [vmem:[%s1 + $0x3c0] sm:$0xff]
  %v140 = vld [vmem:[%s1 + $0x3c8] sm:$0xff]
  %v141 = vld [vmem:[%s1 + $0x3d0] sm:$0xff]
  %v142 = vld [vmem:[%s1 + $0x3d8] sm:$0xff]
  %v143 = vld [vmem:[%s1 + $0x3e0] sm:$0xff]
  %v144 = vld [vmem:[%s1 + $0x3e8] sm:$0xff]
  %v145 = vld [vmem:[%s1 + $0x3f0] sm:$0xff]
  %v146 = vld [vmem:[%s1 + $0x3f8] sm:$0xff]
  %v147 = vpack.c.bf16 %v27, %v19
  %v148 = vpack.c.bf16 %v28, %v20
  %v149 = vpack.c.bf16 %v29, %v21
  %v150 = vpack.c.bf16 %v30, %v22
  %v151 = vpack.c.bf16 %v31, %v23
  %v152 = vpack.c.bf16 %v32, %v24
  %v153 = vpack.c.bf16 %v33, %v25
  %v154 = vpack.c.bf16 %v34, %v26
  %v155 = vpack.c.bf16 %v43, %v35
  %v156 = vpack.c.bf16 %v44, %v36
  %v157 = vpack.c.bf16 %v45, %v37
  %v158 = vpack.c.bf16 %v46, %v38
  %v159 = vpack.c.bf16 %v47, %v39
  %v160 = vpack.c.bf16 %v48, %v40
  %v161 = vpack.c.bf16 %v49, %v41
  %v162 = vpack.c.bf16 %v50, %v42
  %v163 = vpack.c.bf16 %v59, %v51
  %v164 = vpack.c.bf16 %v60, %v52
  %v165 = vpack.c.bf16 %v61, %v53
  %v166 = vpack.c.bf16 %v62, %v54
  %v167 = vpack.c.bf16 %v63, %v55
  %v168 = vpack.c.bf16 %v64, %v56
  %v169 = vpack.c.bf16 %v65, %v57
  %v170 = vpack.c.bf16 %v66, %v58
  %v171 = vpack.c.bf16 %v75, %v67
  %v172 = vpack.c.bf16 %v76, %v68
  %v173 = vpack.c.bf16 %v77, %v69
  %v174 = vpack.c.bf16 %v78, %v70
  %v175 = vpack.c.bf16 %v79, %v71
  %v176 = vpack.c.bf16 %v80, %v72
  %v177 = vpack.c.bf16 %v81, %v73
  %v178 = vpack.c.bf16 %v82, %v74
  %v179 = vpack.c.bf16 %v91, %v83
  %v180 = vpack.c.bf16 %v92, %v84
  %v181 = vpack.c.bf16 %v93, %v85
  %v182 = vpack.c.bf16 %v94, %v86
  %v183 = vpack.c.bf16 %v95, %v87
  %v184 = vpack.c.bf16 %v96, %v88
  %v185 = vpack.c.bf16 %v97, %v89
  %v186 = vpack.c.bf16 %v98, %v90
  %v187 = vpack.c.bf16 %v107, %v99
  %v188 = vpack.c.bf16 %v108, %v100
  %v189 = vpack.c.bf16 %v109, %v101
  %v190 = vpack.c.bf16 %v110, %v102
  %v191 = vpack.c.bf16 %v111, %v103
  %v192 = vpack.c.bf16 %v112, %v104
  %v193 = vpack.c.bf16 %v113, %v105
  %v194 = vpack.c.bf16 %v114, %v106
  %v195 = vpack.c.bf16 %v123, %v115
  %v196 = vpack.c.bf16 %v124, %v116
  %v197 = vpack.c.bf16 %v125, %v117
  %v198 = vpack.c.bf16 %v126, %v118
  %v199 = vpack.c.bf16 %v127, %v119
  %v200 = vpack.c.bf16 %v128, %v120
  %v201 = vpack.c.bf16 %v129, %v121
  %v202 = vpack.c.bf16 %v130, %v122
  %v203 = vpack.c.bf16 %v139, %v131
  %v204 = vpack.c.bf16 %v140, %v132
  %v205 = vpack.c.bf16 %v141, %v133
  %v206 = vpack.c.bf16 %v142, %v134
  %v207 = vpack.c.bf16 %v143, %v135
  %v208 = vpack.c.bf16 %v144, %v136
  %v209 = vpack.c.bf16 %v145, %v137
  %v210 = vpack.c.bf16 %v146, %v138
  %v211 = vld [vmem:[%s0] sm:$0xff]
  %v212 = vld [vmem:[%s0 + $0x8] sm:$0xff]
  %v213 = vld [vmem:[%s0 + $0x10] sm:$0xff]
  %v214 = vld [vmem:[%s0 + $0x18] sm:$0xff]
  %v215 = vld [vmem:[%s0 + $0x20] sm:$0xff]
  %v216 = vld [vmem:[%s0 + $0x28] sm:$0xff]
  %v217 = vld [vmem:[%s0 + $0x30] sm:$0xff]
  %v218 = vld [vmem:[%s0 + $0x38] sm:$0xff]
  %v219 = vld [vmem:[%s0 + $0x40] sm:$0xff]
  %v220 = vld [vmem:[%s0 + $0x48] sm:$0xff]
  %v221 = vld [vmem:[%s0 + $0x50] sm:$0xff]
  %v222 = vld [vmem:[%s0 + $0x58] sm:$0xff]
  %v223 = vld [vmem:[%s0 + $0x60] sm:$0xff]
  %v224 = vld [vmem:[%s0 + $0x68] sm:$0xff]
  %v225 = vld [vmem:[%s0 + $0x70] sm:$0xff]
  %v226 = vld [vmem:[%s0 + $0x78] sm:$0xff]
  %v227 = vld [vmem:[%s2] sm:$0xff]
  %v228 = vld [vmem:[%s2 + $0x8] sm:$0xff]
  %v229 = vld [vmem:[%s2 + $0x10] sm:$0xff]
  %v230 = vld [vmem:[%s2 + $0x18] sm:$0xff]
  %232 = vset.pattern.permute.xlu0 0
  %233 = vperm.xlu0 %232, %v227
  %v234 = vpop.permute.xlu0 %233
  %237 = vset.pattern.permute.xlu0 0
  %238 = vperm.xlu0 %237, %v228
  %v239 = vpop.permute.xlu0 %238
  %242 = vset.pattern.permute.xlu0 0
  %243 = vperm.xlu0 %242, %v229
  %v244 = vpop.permute.xlu0 %243
  %247 = vset.pattern.permute.xlu0 0
  %248 = vperm.xlu0 %247, %v230
  %v249 = vpop.permute.xlu0 %248
  %v267 = vunpack.c.l.b16 %v211
  %v268 = vunpack.c.h.b16 %v211
  %v269 = vunpack.c.l.b16 %v212
  %v270 = vunpack.c.h.b16 %v212
  %v271 = vunpack.c.l.b16 %v213
  %v272 = vunpack.c.h.b16 %v213
  %v273 = vunpack.c.l.b16 %v214
  %v274 = vunpack.c.h.b16 %v214
  %v275 = vunpack.c.l.b16 %v215
  %v276 = vunpack.c.h.b16 %v215
  %v277 = vunpack.c.l.b16 %v216
  %v278 = vunpack.c.h.b16 %v216
  %v279 = vunpack.c.l.b16 %v217
  %v280 = vunpack.c.h.b16 %v217
  %v281 = vunpack.c.l.b16 %v218
  %v282 = vunpack.c.h.b16 %v218
  %v283 = vunpack.c.l.b16 %v219
  %v284 = vunpack.c.h.b16 %v219
  %v285 = vunpack.c.l.b16 %v220
  %v286 = vunpack.c.h.b16 %v220
  %v287 = vunpack.c.l.b16 %v221
  %v288 = vunpack.c.h.b16 %v221
  %v289 = vunpack.c.l.b16 %v222
  %v290 = vunpack.c.h.b16 %v222
  %v291 = vunpack.c.l.b16 %v223
  %v292 = vunpack.c.h.b16 %v223
  %v293 = vunpack.c.l.b16 %v224
  %v294 = vunpack.c.h.b16 %v224
  %v295 = vunpack.c.l.b16 %v225
  %v296 = vunpack.c.h.b16 %v225
  %v297 = vunpack.c.l.b16 %v226
  %v298 = vunpack.c.h.b16 %v226
  %v299 = vpack.c.b16 %v275, %v267
  %v300 = vpack.c.b16 %v276, %v268
  %v301 = vpack.c.b16 %v277, %v269
  %v302 = vpack.c.b16 %v278, %v270
  %v303 = vpack.c.b16 %v279, %v271
  %v304 = vpack.c.b16 %v280, %v272
  %v305 = vpack.c.b16 %v281, %v273
  %v306 = vpack.c.b16 %v282, %v274
  %v307 = vpack.c.b16 %v291, %v283
  %v308 = vpack.c.b16 %v292, %v284
  %v309 = vpack.c.b16 %v293, %v285
  %v310 = vpack.c.b16 %v294, %v286
  %v311 = vpack.c.b16 %v295, %v287
  %v312 = vpack.c.b16 %v296, %v288
  %v313 = vpack.c.b16 %v297, %v289
  %v314 = vpack.c.b16 %v298, %v290
  %331 = vmatprep.subr.bf16.mxu0 %v148
  %332 = vmatpush1.bf16.xpose.msra.mxu0 %v147
  %333 = vmatprep.subr.bf16.mxu0 %v156
  %334 = vmatpush1.bf16.xpose.msra.mxu0 %v155
  %335 = vmatprep.subr.bf16.mxu0 %v164
  %336 = vmatpush1.bf16.xpose.msra.mxu0 %v163
  %337 = vmatprep.subr.bf16.mxu0 %v172
  %338 = vmatpush1.bf16.xpose.msra.mxu0 %v171
  %339 = vmatprep.subr.bf16.mxu0 %v180
  %340 = vmatpush1.bf16.xpose.msra.mxu0 %v179
  %341 = vmatprep.subr.bf16.mxu0 %v188
  %342 = vmatpush1.bf16.xpose.msra.mxu0 %v187
  %343 = vmatprep.subr.bf16.mxu0 %v196
  %344 = vmatpush1.bf16.xpose.msra.mxu0 %v195
  %345 = vmatprep.subr.bf16.mxu0 %v204
  %346 = vmatpush1.bf16.xpose.msra.mxu0 %v203
  %347 = vmatprep.subr.bf16.mxu0 0
  %348 = vmatpush1.bf16.xpose.msra.mxu0 0
  %349 = vmatprep.subr.bf16.mxu0 0
  %350 = vmatpush1.bf16.xpose.msra.mxu0 0
  %351 = vmatprep.subr.bf16.mxu0 0
  %352 = vmatpush1.bf16.xpose.msra.mxu0 0
  %353 = vmatprep.subr.bf16.mxu0 0
  %354 = vmatpush1.bf16.xpose.msra.mxu0 0
  %355 = vmatprep.subr.bf16.mxu0 0
  %356 = vmatpush1.bf16.xpose.msra.mxu0 0
  %357 = vmatprep.subr.bf16.mxu0 0
  %358 = vmatpush1.bf16.xpose.msra.mxu0 0
  %359 = vmatprep.subr.bf16.mxu0 0
  %360 = vmatpush1.bf16.xpose.msra.mxu0 0
  %361 = vmatprep.subr.bf16.mxu0 0
  %362 = vmatpush1.bf16.xpose.msra.mxu0 0
  %363 = vmatprep.mubr.bf16.mxu0 %v300
  %364 = vmatmul.mubr.bf16.gmra.mrb[0].mxu0 %v299
  %v365 = vpop.f32.mrb[0].mxu0
  %v366 = vadd.f32 %v234, %v365
  %v367 = vpop.f32.mrb[0].mxu0
  %v368 = vpop.f32.mrb[0].mxu0
  %v369 = vadd.f32 %v239, %v368
  %v370 = vpop.f32.mrb[0].mxu0
  %371 = vmatprep.mubr.bf16.mxu0 %v308
  %372 = vmatmul.mubr.bf16.gmra.mrb[0].mxu0 %v307
  %v373 = vpop.f32.mrb[0].mxu0
  %v374 = vadd.f32 %v244, %v373
  %v375 = vpop.f32.mrb[0].mxu0
  %v376 = vpop.f32.mrb[0].mxu0
  %v377 = vadd.f32 %v249, %v376
  %v378 = vpop.f32.mrb[0].mxu0
  %379 = vdwg.mxu0
  %380 = vmatprep.subr.bf16.mxu0 %v150
  %381 = vmatpush1.bf16.xpose.msra.mxu0 %v149
  %382 = vmatprep.subr.bf16.mxu0 %v158
  %383 = vmatpush1.bf16.xpose.msra.mxu0 %v157
  %384 = vmatprep.subr.bf16.mxu0 %v166
  %385 = vmatpush1.bf16.xpose.msra.mxu0 %v165
  %386 = vmatprep.subr.bf16.mxu0 %v174
  %387 = vmatpush1.bf16.xpose.msra.mxu0 %v173
  %388 = vmatprep.subr.bf16.mxu0 %v182
  %389 = vmatpush1.bf16.xpose.msra.mxu0 %v181
  %390 = vmatprep.subr.bf16.mxu0 %v190
  %391 = vmatpush1.bf16.xpose.msra.mxu0 %v189
  %392 = vmatprep.subr.bf16.mxu0 %v198
  %393 = vmatpush1.bf16.xpose.msra.mxu0 %v197
  %394 = vmatprep.subr.bf16.mxu0 %v206
  %395 = vmatpush1.bf16.xpose.msra.mxu0 %v205
  %396 = vmatprep.subr.bf16.mxu0 0
  %397 = vmatpush1.bf16.xpose.msra.mxu0 0
  %398 = vmatprep.subr.bf16.mxu0 0
  %399 = vmatpush1.bf16.xpose.msra.mxu0 0
  %400 = vmatprep.subr.bf16.mxu0 0
  %401 = vmatpush1.bf16.xpose.msra.mxu0 0
  %402 = vmatprep.subr.bf16.mxu0 0
  %403 = vmatpush1.bf16.xpose.msra.mxu0 0
  %404 = vmatprep.subr.bf16.mxu0 0
  %405 = vmatpush1.bf16.xpose.msra.mxu0 0
  %406 = vmatprep.subr.bf16.mxu0 0
  %407 = vmatpush1.bf16.xpose.msra.mxu0 0
  %408 = vmatprep.subr.bf16.mxu0 0
  %409 = vmatpush1.bf16.xpose.msra.mxu0 0
  %410 = vmatprep.subr.bf16.mxu0 0
  %411 = vmatpush1.bf16.xpose.msra.mxu0 0
  %412 = vmatprep.mubr.bf16.mxu0 %v302
  %413 = vmatmul.mubr.bf16.gmra.mrb[0].mxu0 %v301
  %v414 = vpop.f32.mrb[0].mxu0
  %v415 = vadd.f32 %v366, %v414
  %v416 = vpop.f32.mrb[0].mxu0
  %v417 = vpop.f32.mrb[0].mxu0
  %v418 = vadd.f32 %v369, %v417
  %v419 = vpop.f32.mrb[0].mxu0
  %420 = vmatprep.mubr.bf16.mxu0 %v310
  %421 = vmatmul.mubr.bf16.gmra.mrb[0].mxu0 %v309
  %v422 = vpop.f32.mrb[0].mxu0
  %v423 = vadd.f32 %v374, %v422
  %v424 = vpop.f32.mrb[0].mxu0
  %v425 = vpop.f32.mrb[0].mxu0
  %v426 = vadd.f32 %v377, %v425
  %v427 = vpop.f32.mrb[0].mxu0
  %428 = vdwg.mxu0
  %429 = vmatprep.subr.bf16.mxu0 %v152
  %430 = vmatpush1.bf16.xpose.msra.mxu0 %v151
  %431 = vmatprep.subr.bf16.mxu0 %v160
  %432 = vmatpush1.bf16.xpose.msra.mxu0 %v159
  %433 = vmatprep.subr.bf16.mxu0 %v168
  %434 = vmatpush1.bf16.xpose.msra.mxu0 %v167
  %435 = vmatprep.subr.bf16.mxu0 %v176
  %436 = vmatpush1.bf16.xpose.msra.mxu0 %v175
  %437 = vmatprep.subr.bf16.mxu0 %v184
  %438 = vmatpush1.bf16.xpose.msra.mxu0 %v183
  %439 = vmatprep.subr.bf16.mxu0 %v192
  %440 = vmatpush1.bf16.xpose.msra.mxu0 %v191
  %441 = vmatprep.subr.bf16.mxu0 %v200
  %442 = vmatpush1.bf16.xpose.msra.mxu0 %v199
  %443 = vmatprep.subr.bf16.mxu0 %v208
  %444 = vmatpush1.bf16.xpose.msra.mxu0 %v207
  %445 = vmatprep.subr.bf16.mxu0 0
  %446 = vmatpush1.bf16.xpose.msra.mxu0 0
  %447 = vmatprep.subr.bf16.mxu0 0
  %448 = vmatpush1.bf16.xpose.msra.mxu0 0
  %449 = vmatprep.subr.bf16.mxu0 0
  %450 = vmatpush1.bf16.xpose.msra.mxu0 0
  %451 = vmatprep.subr.bf16.mxu0 0
  %452 = vmatpush1.bf16.xpose.msra.mxu0 0
  %453 = vmatprep.subr.bf16.mxu0 0
  %454 = vmatpush1.bf16.xpose.msra.mxu0 0
  %455 = vmatprep.subr.bf16.mxu0 0
  %456 = vmatpush1.bf16.xpose.msra.mxu0 0
  %457 = vmatprep.subr.bf16.mxu0 0
  %458 = vmatpush1.bf16.xpose.msra.mxu0 0
  %459 = vmatprep.subr.bf16.mxu0 0
  %460 = vmatpush1.bf16.xpose.msra.mxu0 0
  %461 = vmatprep.mubr.bf16.mxu0 %v304
  %462 = vmatmul.mubr.bf16.gmra.mrb[0].mxu0 %v303
  %v463 = vpop.f32.mrb[0].mxu0
  %v464 = vadd.f32 %v415, %v463
  %v465 = vpop.f32.mrb[0].mxu0
  %v466 = vpop.f32.mrb[0].mxu0
  %v467 = vadd.f32 %v418, %v466
  %v468 = vpop.f32.mrb[0].mxu0
  %469 = vmatprep.mubr.bf16.mxu0 %v312
  %470 = vmatmul.mubr.bf16.gmra.mrb[0].mxu0 %v311
  %v471 = vpop.f32.mrb[0].mxu0
  %v472 = vadd.f32 %v423, %v471
  %v473 = vpop.f32.mrb[0].mxu0
  %v474 = vpop.f32.mrb[0].mxu0
  %v475 = vadd.f32 %v426, %v474
  %v476 = vpop.f32.mrb[0].mxu0
  %477 = vdwg.mxu0
  %478 = vmatprep.subr.bf16.mxu0 %v154
  %479 = vmatpush1.bf16.xpose.msra.mxu0 %v153
  %480 = vmatprep.subr.bf16.mxu0 %v162
  %481 = vmatpush1.bf16.xpose.msra.mxu0 %v161
  %482 = vmatprep.subr.bf16.mxu0 %v170
  %483 = vmatpush1.bf16.xpose.msra.mxu0 %v169
  %484 = vmatprep.subr.bf16.mxu0 %v178
  %485 = vmatpush1.bf16.xpose.msra.mxu0 %v177
  %486 = vmatprep.subr.bf16.mxu0 %v186
  %487 = vmatpush1.bf16.xpose.msra.mxu0 %v185
  %488 = vmatprep.subr.bf16.mxu0 %v194
  %489 = vmatpush1.bf16.xpose.msra.mxu0 %v193
  %490 = vmatprep.subr.bf16.mxu0 %v202
  %491 = vmatpush1.bf16.xpose.msra.mxu0 %v201
  %492 = vmatprep.subr.bf16.mxu0 %v210
  %493 = vmatpush1.bf16.xpose.msra.mxu0 %v209
  %494 = vmatprep.subr.bf16.mxu0 0
  %495 = vmatpush1.bf16.xpose.msra.mxu0 0
  %496 = vmatprep.subr.bf16.mxu0 0
  %497 = vmatpush1.bf16.xpose.msra.mxu0 0
  %498 = vmatprep.subr.bf16.mxu0 0
  %499 = vmatpush1.bf16.xpose.msra.mxu0 0
  %500 = vmatprep.subr.bf16.mxu0 0
  %501 = vmatpush1.bf16.xpose.msra.mxu0 0
  %502 = vmatprep.subr.bf16.mxu0 0
  %503 = vmatpush1.bf16.xpose.msra.mxu0 0
  %504 = vmatprep.subr.bf16.mxu0 0
  %505 = vmatpush1.bf16.xpose.msra.mxu0 0
  %506 = vmatprep.subr.bf16.mxu0 0
  %507 = vmatpush1.bf16.xpose.msra.mxu0 0
  %508 = vmatprep.subr.bf16.mxu0 0
  %509 = vmatpush1.bf16.xpose.msra.mxu0 0
  %510 = vmatprep.mubr.bf16.mxu0 %v306
  %511 = vmatmul.mubr.bf16.gmra.mrb[0].mxu0 %v305
  %v512 = vpop.f32.mrb[0].mxu0
  %v513 = vadd.f32 %v464, %v512
  %v514 = vpop.f32.mrb[0].mxu0
  %v515 = vpop.f32.mrb[0].mxu0
  %v516 = vadd.f32 %v467, %v515
  %v517 = vpop.f32.mrb[0].mxu0
  %518 = vmatprep.mubr.bf16.mxu0 %v314
  %519 = vmatmul.mubr.bf16.gmra.mrb[0].mxu0 %v313
  %v520 = vpop.f32.mrb[0].mxu0
  %v521 = vadd.f32 %v472, %v520
  %v522 = vpop.f32.mrb[0].mxu0
  %v523 = vpop.f32.mrb[0].mxu0
  %v524 = vadd.f32 %v475, %v523
  %v525 = vpop.f32.mrb[0].mxu0
  %526 = vdwg.mxu0
  %v527 = vmax.f32 %v513, 0.0
  %v528 = vmax.f32 %v516, 0.0
  %v529 = vmax.f32 %v521, 0.0
  %v530 = vmax.f32 %v524, 0.0
  %531 = vset.pattern.permute.xlu0 1
  %532 = vperm.xlu0 %531, %v227
  %v533 = vpop.permute.xlu0 %532
  %535 = vset.pattern.permute.xlu0 1
  %536 = vperm.xlu0 %535, %v228
  %v537 = vpop.permute.xlu0 %536
  %539 = vset.pattern.permute.xlu0 1
  %540 = vperm.xlu0 %539, %v229
  %v541 = vpop.permute.xlu0 %540
  %543 = vset.pattern.permute.xlu0 1
  %544 = vperm.xlu0 %543, %v230
  %v545 = vpop.permute.xlu0 %544
  %v547 = vmul.f32 %v527, %v533
  %v548 = vmul.f32 %v528, %v537
  %v549 = vmul.f32 %v529, %v541
  %v550 = vmul.f32 %v530, %v545
  %v551 = vadd.f32 %v547, %v548
  %v552 = vadd.f32 %v551, %v549
  %v553 = vadd.f32 %v552, %v550
  %v554 = vrot.slane %v553, 4
  %v555 = vadd.f32 %v553, %v554
  %v556 = vrot.slane %v555, 2
  %v557 = vadd.f32 %v555, %v556
  %v558 = vrot.slane %v557, 1
  %v559 = vadd.f32 %v557, %v558
  %s560 = sld [smem:[#allocation2]]
  %v561 = vstv %s560
  %v562 = vadd.f32 %v559, %v561
  %563 = vst [vmem:[%s4] sm:$0x1] %v562
  // Predicated region
  $region18: #{layer2fc_forward.1} parent=0 // pred_check
    _
  $region19: #{layer2fc_forward.1} parent=0 // pred_check_branch
    %565 = sbr.rel (0) target = $region21
  $region20: #{layer2fc_forward.1} parent=0 // pred_region
    _
  $region21: #{layer2fc_forward.1} parent=0 // pred_fallthru
    _
  // Predicated region
  $region22: #{layer2fc_forward.1} parent=0 // pred_check
    _
  $region23: #{layer2fc_forward.1} parent=0 // pred_check_branch
    %567 = sbr.rel (0) target = $region25
  $region24: #{layer2fc_forward.1} parent=0 // pred_region
    _
  $region25: #{layer2fc_forward.1} parent=0 // pred_fallthru
    _

</llo_original>
